<compile_context>
chip_gen: v5e
topology: v5e:2x2
jax: 0.10.0
libtpu: 0.0.40
codegen_flags: <defaults>
</compile_context>

<pallas_src>
import functools

import jax
import jax.numpy as jnp
from jax import lax
from jax.experimental import pallas as pl
from jax.experimental.pallas import tpu as pltpu

KH, KW = 3, 3


def _fused_conv_kernel(x_ref, w_ref, b_ref, o_ref):
    # x_ref : (K_pad, L_pad)  im2col patches for the WHOLE batch (lanes = n*P + p)
    # w_ref : (C_pad, K_pad)  fused (w1+w2) weights
    # b_ref : (C_pad, 1)      fused (b1+b2) bias (f32)
    # o_ref : (C_pad, L_pad)  f32 output
    acc = jnp.dot(w_ref[...], x_ref[...], preferred_element_type=jnp.float32)
    o_ref[...] = acc + b_ref[...]          # lane-broadcast add, hidden under MXU pop


def _round_up(v, m):
    return (v + m - 1) // m * m


def mixed_precision_functional_net(x, w1, b1, w2, b2, *, compute_dtype=jnp.float32):
    """x: (N, C_in, H, W) NCHW; w*: (C_out, C_in, 3, 3); b*: (C_out,)."""
    N, C_in, H, W = x.shape
    C_out = w1.shape[0]
    Ho, Wo = H - KH + 1, W - KW + 1
    P = Ho * Wo
    K = C_in * KH * KW
    L = N * P                                   # batch folded into lanes

    K_pad = _round_up(K, 8)                     # sublane granule for the RHS rows
    L_pad = _round_up(L, 128)                   # lane-dense output -> unmasked vst
    C_pad = _round_up(C_out, 8)                 # full sublanes in result vregs

    # ---- algebraic fusion of the two convs (exact in real arithmetic) ----
    w_sum = (w1 + w2).reshape(C_out, K).astype(compute_dtype)   # K-order (ci, kh, kw)
    b_sum = (b1 + b2).astype(jnp.float32).reshape(C_out, 1)

    # ---- glue: im2col patches (K, N*P), K-order matches the weight reshape ----
    xt = jnp.transpose(x, (1, 0, 2, 3)).astype(compute_dtype)   # (C_in, N, H, W)
    patches = jnp.stack(
        [xt[:, :, kh:kh + Ho, kw:kw + Wo] for kh in range(KH) for kw in range(KW)],
        axis=1,                                                  # (C_in, 9, N, Ho, Wo)
    ).reshape(K, L)                                              # (K, N*P)

    patches_p = jnp.pad(patches, ((0, K_pad - K), (0, L_pad - L)))
    w_p = jnp.pad(w_sum, ((0, C_pad - C_out), (0, K_pad - K)))
    b_p = jnp.pad(b_sum, ((0, C_pad - C_out), (0, 0)))

    out_p = pl.pallas_call(
        _fused_conv_kernel,
        out_shape=jax.ShapeDtypeStruct((C_pad, L_pad), jnp.float32),
        # No grid: the whole (tiny) problem is a single kernel invocation.
        in_specs=[
            pl.BlockSpec((K_pad, L_pad), lambda: (0, 0)),
            pl.BlockSpec((C_pad, K_pad), lambda: (0, 0)),
            pl.BlockSpec((C_pad, 1), lambda: (0, 0)),
        ],
        out_specs=pl.BlockSpec((C_pad, L_pad), lambda: (0, 0)),
        compiler_params=pltpu.CompilerParams(
            # Let XLA fuse the pad/concat producers into the pallas_call.
            allow_input_fusion=[True, True, True],
        ),
    )(patches_p, w_p, b_p)

    out = out_p[:C_out, :L].reshape(C_out, N, Ho, Wo)
    return jnp.transpose(out, (1, 0, 2, 3)).astype(x.dtype)


def _reference(x, w1, b1, w2, b2):
    dn = ("NCHW", "OIHW", "NCHW")
    y1 = lax.conv_general_dilated(x, w1, (1, 1), "VALID", dimension_numbers=dn)
    y2 = lax.conv_general_dilated(x, w2, (1, 1), "VALID", dimension_numbers=dn)
    return (y1 + b1[None, :, None, None]) + (y2 + b2[None, :, None, None])


if __name__ == "__main__":
    key = jax.random.PRNGKey(0)
    k_x, k_w1, k_b1, k_w2, k_b2 = jax.random.split(key, 5)

    N, C_in, H, W = 2, 4, 16, 16
    C_out = 3

    x = jax.random.normal(k_x, (N, C_in, H, W), dtype=jnp.float32)

    # deterministic PyTorch-like (kaiming uniform) init
    fan_in = C_in * KH * KW
    bound = 1.0 / (float(fan_in) ** 0.5)
    w1 = jax.random.uniform(k_w1, (C_out, C_in, KH, KW), jnp.float32, -bound, bound)
    b1 = jax.random.uniform(k_b1, (C_out,), jnp.float32, -bound, bound)
    w2 = jax.random.uniform(k_w2, (C_out, C_in, KH, KW), jnp.float32, -bound, bound)
    b2 = jax.random.uniform(k_b2, (C_out,), jnp.float32, -bound, bound)

    ref = _reference(x, w1, b1, w2, b2)

    # f32 path: preserves the PyTorch module's forward semantics exactly.
    fn_f32 = jax.jit(mixed_precision_functional_net)
    out = jax.block_until_ready(fn_f32(x, w1, b1, w2, b2))
    assert out.shape == (N, C_out, H - KH + 1, W - KW + 1), out.shape
    assert jnp.allclose(out, ref, atol=1e-4, rtol=1e-4), (
        float(jnp.max(jnp.abs(out - ref)))
    )

    # bf16 compute path (perf option: bf16-native MXU, half the patch DMA bytes).
    fn_bf16 = jax.jit(functools.partial(
        mixed_precision_functional_net, compute_dtype=jnp.bfloat16))
    out_bf16 = jax.block_until_ready(fn_bf16(x, w1, b1, w2, b2))
    assert jnp.allclose(out_bf16, ref, atol=1e-1, rtol=1e-1), (
        float(jnp.max(jnp.abs(out_bf16 - ref)))
    )

    print("KERNEL_OK")
</pallas_src>

<mosaic_0001>
module attributes {stable_mosaic.version = 11 : i64} {
  func.func @_fused_conv_kernel(%arg0: memref<40x512xf32, #tpu.memory_space<vmem>>, %arg1: memref<8x40xf32, #tpu.memory_space<vmem>>, %arg2: memref<8x1xf32, #tpu.memory_space<vmem>>, %arg3: memref<8x512xf32, #tpu.memory_space<vmem>>) attributes {dimension_semantics = [], scalar_prefetch = 0 : i64, scratch_operands = 0 : i64, tpu.core_type = #tpu.core_type<tc>} {
    %c0 = arith.constant 0 : index
    %c0_0 = arith.constant 0 : index
    %0 = vector.load %arg1[%c0, %c0_0] : memref<8x40xf32, #tpu.memory_space<vmem>>, vector<8x40xf32>
    %c0_1 = arith.constant 0 : index
    %c0_2 = arith.constant 0 : index
    %1 = vector.load %arg0[%c0_1, %c0_2] : memref<40x512xf32, #tpu.memory_space<vmem>>, vector<40x512xf32>
    %cst = arith.constant dense<0.000000e+00> : vector<8x512xf32>
    %2 = tpu.matmul %0, %1, %cst {dimension_numbers = #tpu.dot_dimension_numbers<[1], [0], [0], [1], [0, 0, 1, 1], [], []>} : vector<8x40xf32>, vector<40x512xf32>, vector<8x512xf32> -> vector<8x512xf32>
    %c0_3 = arith.constant 0 : index
    %c0_4 = arith.constant 0 : index
    %3 = vector.load %arg2[%c0_3, %c0_4] : memref<8x1xf32, #tpu.memory_space<vmem>>, vector<8x1xf32>
    %4 = vector.broadcast %3 : vector<8x1xf32> to vector<8x512xf32>
    %5 = arith.addf %2, %4 : vector<8x512xf32>
    %c0_5 = arith.constant 0 : index
    %c0_6 = arith.constant 0 : index
    %6 = vector.load %arg3[%c0_5, %c0_6] : memref<8x512xf32, #tpu.memory_space<vmem>>, vector<8x512xf32>
    tpu.vector_store %arg3[%c0_5, %c0_6], %5 {strides = array<i32>} : memref<8x512xf32, #tpu.memory_space<vmem>>, vector<8x512xf32>,
    return
  }
}

</mosaic_0001>

<llo_original>
// kernel: mixed_precision_functional_net.2
$region0: #{mixed_precision_functional_net.2}
  #allocation0 [shape = 'u32[]', space=smem, size = 0x4, offset = 0x4, fixed_abs, tag = 'smem constant byte address 0x4 - core index']
  #allocation1 [shape = 'u32[72,128]{1,0:T(1,128)}', space=vmem, size = 0x9000, scoped, tag = 'internal scratch']
  #allocation2 [shape = 'u32[2048]{0}', space=vmem, size = 0x2000, scoped, tag = 'scoped memory for mixed_precision_functional_net.2']
  #allocation3 [shape = 'u32[2048]{0}', space=vmem, size = 0x2000, scoped, tag = 'scoped memory for mixed_precision_functional_net.2']
  #allocation4 [shape = 'u32[2048]{0}', space=vmem, size = 0x2000, scoped, tag = 'scoped memory for mixed_precision_functional_net.2']
  #allocation5 [shape = 'u32[2048]{0}', space=vmem, size = 0x2000, scoped, tag = 'scoped memory for mixed_precision_functional_net.2']
  #allocation6 [shape = 'u32[2048]{0}', space=vmem, size = 0x2000, scoped, tag = 'scoped memory for mixed_precision_functional_net.2']
  #allocation7 [shape = 'u32[2048]{0}', space=vmem, size = 0x2000, scoped, tag = 'scoped memory for mixed_precision_functional_net.2']
  #allocation8 [shape = 'u32[2048]{0}', space=vmem, size = 0x2000, scoped, tag = 'scoped memory for mixed_precision_functional_net.2']
  #allocation9 [shape = 'u32[2048]{0}', space=vmem, size = 0x2000, scoped, tag = 'scoped memory for mixed_precision_functional_net.2']
  #allocation10 [shape = 'u32[2048]{0}', space=vmem, size = 0x2000, scoped, tag = 'scoped memory for mixed_precision_functional_net.2']
  #allocation11 [shape = 'u32[2048]{0}', space=vmem, size = 0x2000, scoped, tag = 'scoped memory for mixed_precision_functional_net.2']
  #allocation12 [shape = 'u32[2048]{0}', space=vmem, size = 0x2000, scoped, tag = 'scoped memory for mixed_precision_functional_net.2']
  #allocation13 [shape = 'u32[2048]{0}', space=vmem, size = 0x2000, scoped, tag = 'scoped memory for mixed_precision_functional_net.2']
  #allocation14 [shape = 'u32[2048]{0}', space=vmem, size = 0x2000, scoped, tag = 'scoped memory for mixed_precision_functional_net.2']
  #allocation15 [shape = 'u32[2048]{0}', space=vmem, size = 0x2000, scoped, tag = 'scoped memory for mixed_precision_functional_net.2']
  #allocation16 [shape = 'u32[2048]{0}', space=vmem, size = 0x2000, scoped, tag = 'scoped memory for mixed_precision_functional_net.2']
  %s0 = inlined_call_operand.vmem [shape: f32[36,392], index: 0, kind: input, shape index: {}]
  %s1 = inlined_call_operand.<no memory space> [shape: f32[], index: 1, kind: input, shape index: {}]
  %s2 = inlined_call_operand.vmem [shape: f32[3,1], index: 2, kind: input, shape index: {}]
  %s3 = inlined_call_operand.vmem [shape: f32[3,36], index: 3, kind: input, shape index: {}]
  %s4 = inlined_call_operand.vmem [shape: f32[8,512], index: 4, kind: output, shape index: {}]
  %s5 = sld [smem:[#allocation0]]
  $region22: #{mixed_precision_functional_net.2} parent=0
    _
  %s7 = ssub.s32 1, %s5
  %s8 = scalar_select 0, %s7, %s5
  %v9 = vstv %s1
  %v10 = vstv %s1
  %v11 = vstv %s1
  $region1: #{mixed_precision_functional_net.2} parent=0
    #allocation17 [shape = 'u8[81920]{0}', space=vmem, size = 0x14000, dematerialized = true, scoped, tag = 'FusionAdapter Buffer %fusion.1 = f32[40,512]{1,0:T(8,128)} fusion(%param_0.40, %param_1.40), kind=kLoop, calls=%fused_computation.1.clone, metadata={op_name="jit(mixed_precision_functional_net)/jit(_pad)/pad" stack_frame_id=15}']
    #allocation18 [shape = 'u8[4096]{0}', space=vmem, size = 0x1000, dematerialized = true, scoped, tag = 'FusionAdapter Buffer %fusion.12 = f32[8,40]{1,0:T(8,128)} fusion(%param_3.26, %param_1.40), kind=kLoop, calls=%fused_computation.21.clone, metadata={op_name="jit(mixed_precision_functional_net)/jit(_pad)/pad" stack_frame_id=16}']
    #allocation19 [shape = 'u8[4096]{0}', space=vmem, size = 0x1000, dematerialized = true, scoped, tag = 'FusionAdapter Buffer %fusion.11 = f32[8,1]{1,0:T(8,128)} fusion(%param_2.30, %param_1.40), kind=kLoop, calls=%fused_computation.20.clone, metadata={op_name="jit(mixed_precision_functional_net)/jit(_pad)/pad" stack_frame_id=17}']
    // Predicated region
    $region2: #{mixed_precision_functional_net.2} parent=1 // pred_check
      _
    $region3: #{mixed_precision_functional_net.2} parent=1 // pred_check_branch
      %13 = sbr.rel (0) target = $region5
    $region4: #{mixed_precision_functional_net.2} parent=1 // pred_region
      _
    $region5: #{mixed_precision_functional_net.2} parent=1 // pred_fallthru
      _
    // Predicated region
    $region6: #{mixed_precision_functional_net.2} parent=1 // pred_check
      _
    $region7: #{mixed_precision_functional_net.2} parent=1 // pred_check_branch
      %15 = sbr.rel (0) target = $region9
    $region8: #{mixed_precision_functional_net.2} parent=1 // pred_region
      _
    $region9: #{mixed_precision_functional_net.2} parent=1 // pred_fallthru
      _
    // Predicated region
    $region10: #{mixed_precision_functional_net.2} parent=1 // pred_check
      _
    $region11: #{mixed_precision_functional_net.2} parent=1 // pred_check_branch
      %17 = sbr.rel (0) target = $region13
    $region12: #{mixed_precision_functional_net.2} parent=1 // pred_region
      _
    $region13: #{mixed_precision_functional_net.2} parent=1 // pred_fallthru
      _
    %v18 = vld [vmem:[%s0] sm:$0xff]
    %v19 = vlaneseq
    %v20 = vshrl.u32 %v19, 7
    %vm22 = vcmp.lt.s32.totalorder %v20, 36
    %v23 = vsel %vm22, %v18, %v9
    %v24 = vlaneseq
    %v25 = vand.u32 %v24, 127
    %vm27 = vcmp.lt.s32.totalorder %v25, 392
    %v28 = vsel %vm27, %v23, %v9
    %s30 = ssub.s32 256, 1
    %31 = vst [vmem:[#allocation17] sm:%s30] %v28
    %s32 = scalar_lea.vmem %s0, 8
    %v33 = vld [vmem:[%s32] sm:$0xff]
    %v34 = vlaneseq
    %v35 = vshrl.u32 %v34, 7
    %vm37 = vcmp.lt.s32.totalorder %v35, 36
    %v38 = vsel %vm37, %v33, %v9
    %v39 = vlaneseq
    %v40 = vand.u32 %v39, 127
    %v41 = vadd.s32 %v40, 128
    %vm42 = vcmp.lt.s32.totalorder %v41, 392
    %v43 = vsel %vm42, %v38, %v9
    %s44 = scalar_lea.vmem [#allocation17], 8
    %s46 = ssub.s32 256, 1
    %47 = vst [vmem:[%s44] sm:%s46] %v43
    %s48 = scalar_lea.vmem %s0, 16
    %v49 = vld [vmem:[%s48] sm:$0xff]
    %v50 = vlaneseq
    %v51 = vshrl.u32 %v50, 7
    %vm53 = vcmp.lt.s32.totalorder %v51, 36
    %v54 = vsel %vm53, %v49, %v9
    %v55 = vlaneseq
    %v56 = vand.u32 %v55, 127
    %v57 = vadd.s32 %v56, 256
    %vm58 = vcmp.lt.s32.totalorder %v57, 392
    %v59 = vsel %vm58, %v54, %v9
    %s60 = scalar_lea.vmem [#allocation17], 16
    %s62 = ssub.s32 256, 1
    %63 = vst [vmem:[%s60] sm:%s62] %v59
    %s64 = scalar_lea.vmem %s0, 24
    %v65 = vld [vmem:[%s64] sm:$0xff]
    %v66 = vlaneseq
    %v67 = vshrl.u32 %v66, 7
    %vm69 = vcmp.lt.s32.totalorder %v67, 36
    %v70 = vsel %vm69, %v65, %v9
    %v71 = vlaneseq
    %v72 = vand.u32 %v71, 127
    %v73 = vadd.s32 %v72, 384
    %vm74 = vcmp.lt.s32.totalorder %v73, 392
    %v75 = vsel %vm74, %v70, %v9
    %s76 = scalar_lea.vmem [#allocation17], 24
    %s78 = ssub.s32 256, 1
    %79 = vst [vmem:[%s76] sm:%s78] %v75
    %s80 = scalar_lea.vmem %s0, 32
    %v81 = vld [vmem:[%s80] sm:$0xff]
    %v82 = vlaneseq
    %v83 = vshrl.u32 %v82, 7
    %v84 = vadd.s32 %v83, 8
    %vm85 = vcmp.lt.s32.totalorder %v84, 36
    %v86 = vsel %vm85, %v81, %v9
    %v87 = vlaneseq
    %v88 = vand.u32 %v87, 127
    %vm90 = vcmp.lt.s32.totalorder %v88, 392
    %v91 = vsel %vm90, %v86, %v9
    %s92 = scalar_lea.vmem [#allocation17], 32
    %s94 = ssub.s32 256, 1
    %95 = vst [vmem:[%s92] sm:%s94] %v91
    %s96 = scalar_lea.vmem %s0, 40
    %v97 = vld [vmem:[%s96] sm:$0xff]
    %v98 = vlaneseq
    %v99 = vshrl.u32 %v98, 7
    %v100 = vadd.s32 %v99, 8
    %vm101 = vcmp.lt.s32.totalorder %v100, 36
    %v102 = vsel %vm101, %v97, %v9
    %v103 = vlaneseq
    %v104 = vand.u32 %v103, 127
    %v105 = vadd.s32 %v104, 128
    %vm106 = vcmp.lt.s32.totalorder %v105, 392
    %v107 = vsel %vm106, %v102, %v9
    %s108 = scalar_lea.vmem [#allocation17], 40
    %s110 = ssub.s32 256, 1
    %111 = vst [vmem:[%s108] sm:%s110] %v107
    %s112 = scalar_lea.vmem %s0, 48
    %v113 = vld [vmem:[%s112] sm:$0xff]
    %v114 = vlaneseq
    %v115 = vshrl.u32 %v114, 7
    %v116 = vadd.s32 %v115, 8
    %vm117 = vcmp.lt.s32.totalorder %v116, 36
    %v118 = vsel %vm117, %v113, %v9
    %v119 = vlaneseq
    %v120 = vand.u32 %v119, 127
    %v121 = vadd.s32 %v120, 256
    %vm122 = vcmp.lt.s32.totalorder %v121, 392
    %v123 = vsel %vm122, %v118, %v9
    %s124 = scalar_lea.vmem [#allocation17], 48
    %s126 = ssub.s32 256, 1
    %127 = vst [vmem:[%s124] sm:%s126] %v123
    %s128 = scalar_lea.vmem %s0, 56
    %v129 = vld [vmem:[%s128] sm:$0xff]
    %v130 = vlaneseq
    %v131 = vshrl.u32 %v130, 7
    %v132 = vadd.s32 %v131, 8
    %vm133 = vcmp.lt.s32.totalorder %v132, 36
    %v134 = vsel %vm133, %v129, %v9
    %v135 = vlaneseq
    %v136 = vand.u32 %v135, 127
    %v137 = vadd.s32 %v136, 384
    %vm138 = vcmp.lt.s32.totalorder %v137, 392
    %v139 = vsel %vm138, %v134, %v9
    %s140 = scalar_lea.vmem [#allocation17], 56
    %s142 = ssub.s32 256, 1
    %143 = vst [vmem:[%s140] sm:%s142] %v139
    %s144 = scalar_lea.vmem %s0, 64
    %v145 = vld [vmem:[%s144] sm:$0xff]
    %v146 = vlaneseq
    %v147 = vshrl.u32 %v146, 7
    %v148 = vadd.s32 %v147, 16
    %vm149 = vcmp.lt.s32.totalorder %v148, 36
    %v150 = vsel %vm149, %v145, %v9
    %v151 = vlaneseq
    %v152 = vand.u32 %v151, 127
    %vm154 = vcmp.lt.s32.totalorder %v152, 392
    %v155 = vsel %vm154, %v150, %v9
    %s156 = scalar_lea.vmem [#allocation17], 64
    %s158 = ssub.s32 256, 1
    %159 = vst [vmem:[%s156] sm:%s158] %v155
    %s160 = scalar_lea.vmem %s0, 72
    %v161 = vld [vmem:[%s160] sm:$0xff]
    %v162 = vlaneseq
    %v163 = vshrl.u32 %v162, 7
    %v164 = vadd.s32 %v163, 16
    %vm165 = vcmp.lt.s32.totalorder %v164, 36
    %v166 = vsel %vm165, %v161, %v9
    %v167 = vlaneseq
    %v168 = vand.u32 %v167, 127
    %v169 = vadd.s32 %v168, 128
    %vm170 = vcmp.lt.s32.totalorder %v169, 392
    %v171 = vsel %vm170, %v166, %v9
    %s172 = scalar_lea.vmem [#allocation17], 72
    %s174 = ssub.s32 256, 1
    %175 = vst [vmem:[%s172] sm:%s174] %v171
    %s176 = scalar_lea.vmem %s0, 80
    %v177 = vld [vmem:[%s176] sm:$0xff]
    %v178 = vlaneseq
    %v179 = vshrl.u32 %v178, 7
    %v180 = vadd.s32 %v179, 16
    %vm181 = vcmp.lt.s32.totalorder %v180, 36
    %v182 = vsel %vm181, %v177, %v9
    %v183 = vlaneseq
    %v184 = vand.u32 %v183, 127
    %v185 = vadd.s32 %v184, 256
    %vm186 = vcmp.lt.s32.totalorder %v185, 392
    %v187 = vsel %vm186, %v182, %v9
    %s188 = scalar_lea.vmem [#allocation17], 80
    %s190 = ssub.s32 256, 1
    %191 = vst [vmem:[%s188] sm:%s190] %v187
    %s192 = scalar_lea.vmem %s0, 88
    %v193 = vld [vmem:[%s192] sm:$0xff]
    %v194 = vlaneseq
    %v195 = vshrl.u32 %v194, 7
    %v196 = vadd.s32 %v195, 16
    %vm197 = vcmp.lt.s32.totalorder %v196, 36
    %v198 = vsel %vm197, %v193, %v9
    %v199 = vlaneseq
    %v200 = vand.u32 %v199, 127
    %v201 = vadd.s32 %v200, 384
    %vm202 = vcmp.lt.s32.totalorder %v201, 392
    %v203 = vsel %vm202, %v198, %v9
    %s204 = scalar_lea.vmem [#allocation17], 88
    %s206 = ssub.s32 256, 1
    %207 = vst [vmem:[%s204] sm:%s206] %v203
    %s208 = scalar_lea.vmem %s0, 96
    %v209 = vld [vmem:[%s208] sm:$0xff]
    %v210 = vlaneseq
    %v211 = vshrl.u32 %v210, 7
    %v212 = vadd.s32 %v211, 24
    %vm213 = vcmp.lt.s32.totalorder %v212, 36
    %v214 = vsel %vm213, %v209, %v9
    %v215 = vlaneseq
    %v216 = vand.u32 %v215, 127
    %vm218 = vcmp.lt.s32.totalorder %v216, 392
    %v219 = vsel %vm218, %v214, %v9
    %s220 = scalar_lea.vmem [#allocation17], 96
    %s222 = ssub.s32 256, 1
    %223 = vst [vmem:[%s220] sm:%s222] %v219
    %s224 = scalar_lea.vmem %s0, 104
    %v225 = vld [vmem:[%s224] sm:$0xff]
    %v226 = vlaneseq
    %v227 = vshrl.u32 %v226, 7
    %v228 = vadd.s32 %v227, 24
    %vm229 = vcmp.lt.s32.totalorder %v228, 36
    %v230 = vsel %vm229, %v225, %v9
    %v231 = vlaneseq
    %v232 = vand.u32 %v231, 127
    %v233 = vadd.s32 %v232, 128
    %vm234 = vcmp.lt.s32.totalorder %v233, 392
    %v235 = vsel %vm234, %v230, %v9
    %s236 = scalar_lea.vmem [#allocation17], 104
    %s238 = ssub.s32 256, 1
    %239 = vst [vmem:[%s236] sm:%s238] %v235
    %s240 = scalar_lea.vmem %s0, 112
    %v241 = vld [vmem:[%s240] sm:$0xff]
    %v242 = vlaneseq
    %v243 = vshrl.u32 %v242, 7
    %v244 = vadd.s32 %v243, 24
    %vm245 = vcmp.lt.s32.totalorder %v244, 36
    %v246 = vsel %vm245, %v241, %v9
    %v247 = vlaneseq
    %v248 = vand.u32 %v247, 127
    %v249 = vadd.s32 %v248, 256
    %vm250 = vcmp.lt.s32.totalorder %v249, 392
    %v251 = vsel %vm250, %v246, %v9
    %s252 = scalar_lea.vmem [#allocation17], 112
    %s254 = ssub.s32 256, 1
    %255 = vst [vmem:[%s252] sm:%s254] %v251
    %s256 = scalar_lea.vmem %s0, 120
    %v257 = vld [vmem:[%s256] sm:$0xff]
    %v258 = vlaneseq
    %v259 = vshrl.u32 %v258, 7
    %v260 = vadd.s32 %v259, 24
    %vm261 = vcmp.lt.s32.totalorder %v260, 36
    %v262 = vsel %vm261, %v257, %v9
    %v263 = vlaneseq
    %v264 = vand.u32 %v263, 127
    %v265 = vadd.s32 %v264, 384
    %vm266 = vcmp.lt.s32.totalorder %v265, 392
    %v267 = vsel %vm266, %v262, %v9
    %s268 = scalar_lea.vmem [#allocation17], 120
    %s270 = ssub.s32 256, 1
    %271 = vst [vmem:[%s268] sm:%s270] %v267
    %s272 = scalar_lea.vmem %s0, 128
    %v273 = vld [vmem:[%s272] sm:$0xff]
    %v274 = vlaneseq
    %v275 = vshrl.u32 %v274, 7
    %v276 = vadd.s32 %v275, 32
    %vm277 = vcmp.lt.s32.totalorder %v276, 36
    %v278 = vsel %vm277, %v273, %v9
    %v279 = vlaneseq
    %v280 = vand.u32 %v279, 127
    %vm282 = vcmp.lt.s32.totalorder %v280, 392
    %v283 = vsel %vm282, %v278, %v9
    %s284 = scalar_lea.vmem [#allocation17], 128
    %s286 = ssub.s32 256, 1
    %287 = vst [vmem:[%s284] sm:%s286] %v283
    %s288 = scalar_lea.vmem %s0, 136
    %v289 = vld [vmem:[%s288] sm:$0xff]
    %v290 = vlaneseq
    %v291 = vshrl.u32 %v290, 7
    %v292 = vadd.s32 %v291, 32
    %vm293 = vcmp.lt.s32.totalorder %v292, 36
    %v294 = vsel %vm293, %v289, %v9
    %v295 = vlaneseq
    %v296 = vand.u32 %v295, 127
    %v297 = vadd.s32 %v296, 128
    %vm298 = vcmp.lt.s32.totalorder %v297, 392
    %v299 = vsel %vm298, %v294, %v9
    %s300 = scalar_lea.vmem [#allocation17], 136
    %s302 = ssub.s32 256, 1
    %303 = vst [vmem:[%s300] sm:%s302] %v299
    %s304 = scalar_lea.vmem %s0, 144
    %v305 = vld [vmem:[%s304] sm:$0xff]
    %v306 = vlaneseq
    %v307 = vshrl.u32 %v306, 7
    %v308 = vadd.s32 %v307, 32
    %vm309 = vcmp.lt.s32.totalorder %v308, 36
    %v310 = vsel %vm309, %v305, %v9
    %v311 = vlaneseq
    %v312 = vand.u32 %v311, 127
    %v313 = vadd.s32 %v312, 256
    %vm314 = vcmp.lt.s32.totalorder %v313, 392
    %v315 = vsel %vm314, %v310, %v9
    %s316 = scalar_lea.vmem [#allocation17], 144
    %s318 = ssub.s32 256, 1
    %319 = vst [vmem:[%s316] sm:%s318] %v315
    %s320 = scalar_lea.vmem %s0, 152
    %v321 = vld [vmem:[%s320] sm:$0xff]
    %v322 = vlaneseq
    %v323 = vshrl.u32 %v322, 7
    %v324 = vadd.s32 %v323, 32
    %vm325 = vcmp.lt.s32.totalorder %v324, 36
    %v326 = vsel %vm325, %v321, %v9
    %v327 = vlaneseq
    %v328 = vand.u32 %v327, 127
    %v329 = vadd.s32 %v328, 384
    %vm330 = vcmp.lt.s32.totalorder %v329, 392
    %v331 = vsel %vm330, %v326, %v9
    %s332 = scalar_lea.vmem [#allocation17], 152
    %s334 = ssub.s32 256, 1
    %335 = vst [vmem:[%s332] sm:%s334] %v331
    %v336 = vld [vmem:[%s3] sm:$0x7]
    %v337 = vlaneseq
    %v338 = vshrl.u32 %v337, 7
    %vm340 = vcmp.lt.s32.totalorder %v338, 3
    %v341 = vsel %vm340, %v336, %v10
    %v342 = vlaneseq
    %v343 = vand.u32 %v342, 127
    %vm345 = vcmp.lt.s32.totalorder %v343, 36
    %v346 = vsel %vm345, %v341, %v10
    %s348 = ssub.s32 256, 1
    %349 = vst [vmem:[#allocation18] sm:%s348] %v346
    %v350 = vld [vmem:[%s2] sm:$0x7]
    %v351 = vlaneseq
    %v352 = vshrl.u32 %v351, 7
    %vm354 = vcmp.lt.s32.totalorder %v352, 3
    %v355 = vsel %vm354, %v350, %v11
    %v356 = vlaneseq
    %v357 = vand.u32 %v356, 127
    %vm359 = vcmp.lt.s32.totalorder %v357, 1
    %v360 = vsel %vm359, %v355, %v11
    %s362 = ssub.s32 256, 1
    %363 = vst [vmem:[#allocation19] sm:%s362] %v360
    %v364 = vld [vmem:[#allocation18] sm:$0xff]
    %v365 = vld [vmem:[#allocation17] sm:$0xff]
    %v366 = vld [vmem:[#allocation17 + $0x8] sm:$0xff]
    %v367 = vld [vmem:[#allocation17 + $0x10] sm:$0xff]
    %v368 = vld [vmem:[#allocation17 + $0x18] sm:$0xff]
    %v369 = vld [vmem:[#allocation17 + $0x20] sm:$0xff]
    %v370 = vld [vmem:[#allocation17 + $0x28] sm:$0xff]
    %v371 = vld [vmem:[#allocation17 + $0x30] sm:$0xff]
    %v372 = vld [vmem:[#allocation17 + $0x38] sm:$0xff]
    %v373 = vld [vmem:[#allocation17 + $0x40] sm:$0xff]
    %v374 = vld [vmem:[#allocation17 + $0x48] sm:$0xff]
    %v375 = vld [vmem:[#allocation17 + $0x50] sm:$0xff]
    %v376 = vld [vmem:[#allocation17 + $0x58] sm:$0xff]
    %v377 = vld [vmem:[#allocation17 + $0x60] sm:$0xff]
    %v378 = vld [vmem:[#allocation17 + $0x68] sm:$0xff]
    %v379 = vld [vmem:[#allocation17 + $0x70] sm:$0xff]
    %v380 = vld [vmem:[#allocation17 + $0x78] sm:$0xff]
    %v381 = vld [vmem:[#allocation17 + $0x80] sm:$0xff]
    %v382 = vld [vmem:[#allocation17 + $0x88] sm:$0xff]
    %v383 = vld [vmem:[#allocation17 + $0x90] sm:$0xff]
    %v384 = vld [vmem:[#allocation17 + $0x98] sm:$0xff]
    %v385 = vld [vmem:[#allocation19] sm:$0xff]
    %387 = vset.pattern.permute.xlu0 0
    %388 = vperm.xlu0 %387, %v385
    %v389 = vpop.permute.xlu0 %388
    %vm391 = vcmask 326656
    %v393 = vsel %vm391, %v364, 0
    %395 = vmatpush.msra.mxu0 0.0
    %396 = vmatpush.msra.mxu0 0.0
    %397 = vmatpush.msra.mxu0 0.0
    %398 = vmatpush.msra.mxu0 0.0
    %399 = vmatpush.msra.mxu0 0.0
    %400 = vmatpush.msra.mxu0 0.0
    %401 = vmatpush.msra.mxu0 0.0
    %402 = vmatpush.msra.mxu0 0.0
    %403 = vmatpush.msra.mxu0 0.0
    %404 = vmatpush.msra.mxu0 0.0
    %405 = vmatpush.msra.mxu0 0.0
    %406 = vmatpush.msra.mxu0 %v381
    %407 = vmatpush.msra.mxu0 %v377
    %408 = vmatpush.msra.mxu0 %v373
    %409 = vmatpush.msra.mxu0 %v369
    %410 = vmatpush.msra.mxu0 %v365
    %411 = vmatmul.f32.gmra.mxu0 %v393
    %v412 = vpop.f32.mrf.mxu0
    %v413 = vadd.f32 %v389, %v412
    %414 = vdwg.mxu0
    %415 = vmatpush.msra.mxu0 0.0
    %416 = vmatpush.msra.mxu0 0.0
    %417 = vmatpush.msra.mxu0 0.0
    %418 = vmatpush.msra.mxu0 0.0
    %419 = vmatpush.msra.mxu0 0.0
    %420 = vmatpush.msra.mxu0 0.0
    %421 = vmatpush.msra.mxu0 0.0
    %422 = vmatpush.msra.mxu0 0.0
    %423 = vmatpush.msra.mxu0 0.0
    %424 = vmatpush.msra.mxu0 0.0
    %425 = vmatpush.msra.mxu0 0.0
    %426 = vmatpush.msra.mxu0 %v382
    %427 = vmatpush.msra.mxu0 %v378
    %428 = vmatpush.msra.mxu0 %v374
    %429 = vmatpush.msra.mxu0 %v370
    %430 = vmatpush.msra.mxu0 %v366
    %431 = vmatmul.f32.gmra.mxu0 %v393
    %v432 = vpop.f32.mrf.mxu0
    %v433 = vadd.f32 %v389, %v432
    %434 = vdwg.mxu0
    %435 = vmatpush.msra.mxu0 0.0
    %436 = vmatpush.msra.mxu0 0.0
    %437 = vmatpush.msra.mxu0 0.0
    %438 = vmatpush.msra.mxu0 0.0
    %439 = vmatpush.msra.mxu0 0.0
    %440 = vmatpush.msra.mxu0 0.0
    %441 = vmatpush.msra.mxu0 0.0
    %442 = vmatpush.msra.mxu0 0.0
    %443 = vmatpush.msra.mxu0 0.0
    %444 = vmatpush.msra.mxu0 0.0
    %445 = vmatpush.msra.mxu0 0.0
    %446 = vmatpush.msra.mxu0 %v383
    %447 = vmatpush.msra.mxu0 %v379
    %448 = vmatpush.msra.mxu0 %v375
    %449 = vmatpush.msra.mxu0 %v371
    %450 = vmatpush.msra.mxu0 %v367
    %451 = vmatmul.f32.gmra.mxu0 %v393
    %v452 = vpop.f32.mrf.mxu0
    %v453 = vadd.f32 %v389, %v452
    %454 = vdwg.mxu0
    %455 = vmatpush.msra.mxu0 0.0
    %456 = vmatpush.msra.mxu0 0.0
    %457 = vmatpush.msra.mxu0 0.0
    %458 = vmatpush.msra.mxu0 0.0
    %459 = vmatpush.msra.mxu0 0.0
    %460 = vmatpush.msra.mxu0 0.0
    %461 = vmatpush.msra.mxu0 0.0
    %462 = vmatpush.msra.mxu0 0.0
    %463 = vmatpush.msra.mxu0 0.0
    %464 = vmatpush.msra.mxu0 0.0
    %465 = vmatpush.msra.mxu0 0.0
    %466 = vmatpush.msra.mxu0 %v384
    %467 = vmatpush.msra.mxu0 %v380
    %468 = vmatpush.msra.mxu0 %v376
    %469 = vmatpush.msra.mxu0 %v372
    %470 = vmatpush.msra.mxu0 %v368
    %471 = vmatmul.f32.gmra.mxu0 %v393
    %v472 = vpop.f32.mrf.mxu0
    %v473 = vadd.f32 %v389, %v472
    %474 = vdwg.mxu0
    %475 = vst [vmem:[%s4] sm:$0xff] %v413
    %476 = vst [vmem:[%s4 + $0x8] sm:$0xff] %v433
    %477 = vst [vmem:[%s4 + $0x10] sm:$0xff] %v453
    %478 = vst [vmem:[%s4 + $0x18] sm:$0xff] %v473
    // Predicated region
    $region14: #{mixed_precision_functional_net.2} parent=1 // pred_check
      _
    $region15: #{mixed_precision_functional_net.2} parent=1 // pred_check_branch
      %480 = sbr.rel (0) target = $region17
    $region16: #{mixed_precision_functional_net.2} parent=1 // pred_region
      _
    $region17: #{mixed_precision_functional_net.2} parent=1 // pred_fallthru
      _
    // Predicated region
    $region18: #{mixed_precision_functional_net.2} parent=1 // pred_check
      _
    $region19: #{mixed_precision_functional_net.2} parent=1 // pred_check_branch
      %482 = sbr.rel (0) target = $region21
    $region20: #{mixed_precision_functional_net.2} parent=1 // pred_region
      _
    $region21: #{mixed_precision_functional_net.2} parent=1 // pred_fallthru
      _

</llo_original>
